<compile_context>
chip_gen: v5e
topology: v5e:2x2
jax: 0.10.0
libtpu: 0.0.40
codegen_flags: <defaults>
</compile_context>

<pallas_src>
import functools

import jax
import jax.numpy as jnp
from jax.experimental import pallas as pl
from jax.experimental.pallas import tpu as pltpu


def _round_up(x, m):
    return ((x + m - 1) // m) * m


# ----------------------------------------------------------------------------
# Parameter / kernel-window setup (plain-JAX glue, tiny: K x C elements)
# ----------------------------------------------------------------------------
def _i0(x):
    """Modified Bessel function of the first kind, order 0 (power series)."""
    # Converges quickly for the small beta values used here (beta init = 1/(2K)).
    # TODO(synk): series truncated at 20 terms; adequate for moderate learnable beta.
    x2 = (x * x) * 0.25
    term = jnp.ones_like(x)
    acc = jnp.ones_like(x)
    for m in range(1, 21):
        term = term * x2 / (m * m)
        acc = acc + term
    return acc


def kaiser_windows(kernel_size, weights):
    """Mirror of impulse_responses.Kaiser_windows: returns (1, K, C, 1)."""
    # TODO(synk): exact source of impulse_responses.Kaiser_windows is unavailable;
    # the standard symmetric Kaiser window w[n] = I0(beta*sqrt(1-r^2))/I0(beta) is used.
    C = weights.shape[2]
    beta = weights.astype(jnp.float32)
    if kernel_size == 1:
        return jnp.ones((1, 1, C, 1), jnp.float32)
    n = jnp.arange(kernel_size, dtype=jnp.float32).reshape(1, kernel_size, 1, 1)
    ratio = (2.0 * n - (kernel_size - 1)) / float(kernel_size - 1)
    arg = beta * jnp.sqrt(jnp.clip(1.0 - ratio * ratio, 0.0, 1.0))
    return _i0(arg) / _i0(beta)  # (1, K, C, 1)


# ----------------------------------------------------------------------------
# Pallas kernel: depthwise 1-D conv, stride folded in (polyphase), VALID padding
# ----------------------------------------------------------------------------
def _adapt_pool_kernel(xm_ref, xh_ref, w_ref, o_ref, *, kernel_size, strides):
    # xm_ref: (s, rt, T)      main phase block for this output tile
    # xh_ref: (s, rt, halo)   128-lane (or more) halo block right after the main block
    # w_ref : (rt, K+1)       per-row taps, last column = bias (zeros if unused)
    # o_ref : (rt, T)         lane-dense output tile
    K, s = kernel_size, strides
    rt, T = o_ref.shape
    ncat = xm_ref.shape[-1] + xh_ref.shape[-1]

    w = w_ref[...].astype(jnp.float32)  # single VMEM read, sliced in-register below

    # Load each needed phase exactly once (main ++ halo), then generate taps via rolls.
    phases = [
        jnp.concatenate([xm_ref[r], xh_ref[r]], axis=-1).astype(jnp.float32)
        for r in range(min(s, K))
    ]

    acc = jnp.zeros((rt, T), jnp.float32) + w[:, K:K + 1]  # bias init (zeros if no bias)
    for k in range(K):  # K is small and static -> unrolled
        r, q = k % s, k // s
        xk = phases[r]
        if q:
            # output[t] needs phase_r[t + q]; roll by (ncat - q) == roll by -q (XLU).
            xk = pltpu.roll(xk, shift=ncat - q, axis=1)
        acc = acc + xk[:, :T] * w[:, k:k + 1]
    o_ref[...] = acc.astype(o_ref.dtype)


def adapt_pooling_forward(x, weights, kernel_size, strides=1, bias=None):
    """x: (B, C, L); weights: (1, 1, C, 1); bias: (C,) or None. Returns (B, C, L_out)."""
    B, C, L = x.shape
    K, s = int(kernel_size), int(strides)
    assert s >= 1 and L >= K
    L_out = (L - K) // s + 1

    # Depthwise kernel exactly as the PyTorch module builds it:
    #   kernel = Kaiser_windows(K, w).reshape(-1, K, C).permute(2, 0, 1)  -> (C, 1, K)
    win = kaiser_windows(K, weights)                      # (1, K, C, 1)
    w_ck = jnp.transpose(win.reshape(K, C), (1, 0))       # (C, K)

    # ---- fold batch into the sublane (row) axis ----------------------------
    R = B * C
    w_rows = jnp.tile(w_ck, (B, 1)).astype(jnp.float32)   # (R, K), row = b*C + c
    if bias is not None:
        b_rows = jnp.tile(bias.astype(jnp.float32), B)[:, None]   # (R, 1)
    else:
        b_rows = jnp.zeros((R, 1), jnp.float32)
    w_aug = jnp.concatenate([w_rows, b_rows], axis=1)     # (R, K+1)

    # ---- tile sizing (lane-dense, VMEM-bounded) -----------------------------
    q_max = (K - 1) // s                                   # max phase shift of any tap
    halo = _round_up(max(q_max, 1), 128)                   # halo block (multiple of 128)
    T = max(halo, min(1024, _round_up(L_out, 128)))        # output lanes per tile
    T = _round_up(T, halo)                                 # halo index_map needs halo | T
    row_tile = min(256, _round_up(R, 8))

    def blk_bytes(rt, t):  # one block set (main + halo + weights + out), f32
        return 4 * (s * rt * (t + halo) + rt * t + rt * (K + 1))

    while blk_bytes(row_tile, T) > 4 * 1024 * 1024 and T > halo:
        T = max(halo, _round_up(T // 2, halo))
    while blk_bytes(row_tile, T) > 4 * 1024 * 1024 and row_tile > 8:
        row_tile = max(8, row_tile // 2)

    Rp = _round_up(R, row_tile)
    num_t = pl.cdiv(L_out, T)
    L_out_pad = num_t * T
    M_pad = L_out_pad + halo          # padded per-phase length
    L_pad = M_pad * s                 # padded input length (>= every sample we need)

    # ---- phase decomposition: x_ph[r, row, m] = x[row, m*s + r] ------------
    x2 = x.reshape(R, L).astype(jnp.float32)
    if L_pad >= L:
        x2 = jnp.pad(x2, ((0, Rp - R), (0, L_pad - L)))
    else:  # only the last (< s) samples are dropped; no valid output reads them
        x2 = jnp.pad(x2[:, :L_pad], ((0, Rp - R), (0, 0)))
    x_ph = x2.reshape(Rp, M_pad, s).transpose(2, 0, 1)     # (s, Rp, M_pad)
    w_aug = jnp.pad(w_aug, ((0, Rp - R), (0, 0)))          # (Rp, K+1)

    hpb = T // halo                                        # halo blocks per output tile
    kernel_fn = functools.partial(_adapt_pool_kernel, kernel_size=K, strides=s)

    out_pad = pl.pallas_call(
        kernel_fn,
        out_shape=jax.ShapeDtypeStruct((Rp, L_out_pad), jnp.float32),
        grid=(Rp // row_tile, num_t),
        in_specs=[
            # main phase window for this output tile
            pl.BlockSpec((s, row_tile, T), lambda i, j: (0, i, j)),
            # halo: the 128-lane block immediately after the main window
            pl.BlockSpec((s, row_tile, halo), lambda i, j: (0, i, (j + 1) * hpb)),
            # per-row taps (+ bias column), resident across length tiles
            pl.BlockSpec((row_tile, K + 1), lambda i, j: (i, 0)),
        ],
        out_specs=pl.BlockSpec((row_tile, T), lambda i, j: (i, j)),
        compiler_params=pltpu.CompilerParams(
            dimension_semantics=("parallel", "parallel"),
            vmem_limit_bytes=32 * 1024 * 1024,
        ),
    )(x_ph, x_ph, w_aug)

    return out_pad[:R, :L_out].reshape(B, C, L_out).astype(x.dtype)


# ----------------------------------------------------------------------------
# Demo / self-check
# ----------------------------------------------------------------------------
if __name__ == "__main__":
    def reference(x, weights, K, s, bias):
        C = x.shape[1]
        win = kaiser_windows(K, weights)
        w_ck = jnp.transpose(win.reshape(K, C), (1, 0))
        ref = jax.lax.conv_general_dilated(
            x, w_ck[:, None, :], window_strides=(s,), padding="VALID",
            feature_group_count=C, dimension_numbers=("NCH", "OIH", "NCH"))
        if bias is not None:
            ref = ref + bias[None, :, None]
        return ref

    # Case 1: module defaults (stride 1, no bias), matching __init__ parameter init.
    B, C, L, K, s = 2, 4, 128, 8, 1
    x = jax.random.normal(jax.random.PRNGKey(0), (B, C, L), dtype=jnp.float32)
    weights = jnp.ones((1, 1, C, 1), dtype=jnp.float32) / (K * 2)
    out = jax.block_until_ready(adapt_pooling_forward(x, weights, K, strides=s))
    ref = reference(x, weights, K, s, None)
    assert out.shape == (B, C, (L - K) // s + 1), out.shape
    assert jnp.allclose(out, ref, atol=1e-5, rtol=1e-5), float(jnp.max(jnp.abs(out - ref)))

    # Case 2: strided + bias (exercises in-kernel polyphase stride folding).
    B, C, L, K, s = 2, 4, 61, 5, 2
    x = jax.random.normal(jax.random.PRNGKey(1), (B, C, L), dtype=jnp.float32)
    weights = jnp.ones((1, 1, C, 1), dtype=jnp.float32) / (K * 2)
    bias = jnp.ones((C,), dtype=jnp.float32)
    out = jax.block_until_ready(
        adapt_pooling_forward(x, weights, K, strides=s, bias=bias))
    ref = reference(x, weights, K, s, bias)
    assert out.shape == (B, C, (L - K) // s + 1), out.shape
    assert jnp.allclose(out, ref, atol=1e-5, rtol=1e-5), float(jnp.max(jnp.abs(out - ref)))

    print("KERNEL_OK")
</pallas_src>

<mosaic_0001>
module attributes {stable_mosaic.version = 11 : i64} {
  func.func @_adapt_pool_kernel(%arg0: i32, %arg1: i32, %arg2: memref<1x8x128xf32, #tpu.memory_space<vmem>>, %arg3: memref<1x8x128xf32, #tpu.memory_space<vmem>>, %arg4: memref<8x9xf32, #tpu.memory_space<vmem>>, %arg5: memref<8x128xf32, #tpu.memory_space<vmem>>) attributes {dimension_semantics = [#tpu.dimension_semantics<parallel>, #tpu.dimension_semantics<parallel>], iteration_bounds = array<i64: 1, 1>, scalar_prefetch = 0 : i64, scratch_operands = 0 : i64, tpu.core_type = #tpu.core_type<tc>, window_params = [{transform_indices = @transform_0, window_bounds = array<i64: 1, 8, 128>}, {transform_indices = @transform_1, window_bounds = array<i64: 1, 8, 128>}, {transform_indices = @transform_2, window_bounds = array<i64: 8, 9>}, {transform_indices = @transform_3, window_bounds = array<i64: 8, 128>}]} {
    %c0 = arith.constant 0 : index
    %c0_0 = arith.constant 0 : index
    %0 = vector.load %arg4[%c0, %c0_0] : memref<8x9xf32, #tpu.memory_space<vmem>>, vector<8x9xf32>
    %c0_1 = arith.constant 0 : index
    %c0_2 = arith.constant 0 : index
    %c0_3 = arith.constant 0 : index
    %1 = vector.load %arg2[%c0_1, %c0_2, %c0_3] : memref<1x8x128xf32, #tpu.memory_space<vmem>>, vector<1x8x128xf32>
    %2 = vector.shape_cast %1 : vector<1x8x128xf32> to vector<8x128xf32>
    %c0_4 = arith.constant 0 : index
    %c0_5 = arith.constant 0 : index
    %c0_6 = arith.constant 0 : index
    %3 = vector.load %arg3[%c0_4, %c0_5, %c0_6] : memref<1x8x128xf32, #tpu.memory_space<vmem>>, vector<1x8x128xf32>
    %4 = vector.shape_cast %3 : vector<1x8x128xf32> to vector<8x128xf32>
    %5 = tpu.concatenate %2, %4 in 1 : vector<8x128xf32>, vector<8x128xf32> -> vector<8x256xf32>
    %cst = arith.constant 0.000000e+00 : f32
    %6 = vector.broadcast %cst : f32 to vector<8x128xf32>
    %7 = vector.extract_strided_slice %0 {offsets = [0, 8], sizes = [8, 1], strides = [1, 1]} : vector<8x9xf32> to vector<8x1xf32>
    %8 = vector.broadcast %7 : vector<8x1xf32> to vector<8x128xf32>
    %9 = arith.addf %6, %8 : vector<8x128xf32>
    %10 = vector.extract_strided_slice %5 {offsets = [0, 0], sizes = [8, 128], strides = [1, 1]} : vector<8x256xf32> to vector<8x128xf32>
    %11 = vector.extract_strided_slice %0 {offsets = [0, 0], sizes = [8, 1], strides = [1, 1]} : vector<8x9xf32> to vector<8x1xf32>
    %12 = vector.broadcast %11 : vector<8x1xf32> to vector<8x128xf32>
    %13 = arith.mulf %10, %12 : vector<8x128xf32>
    %14 = arith.addf %9, %13 : vector<8x128xf32>
    %c255_i32 = arith.constant 255 : i32
    %15 = tpu.dynamic_rotate %5 by %c255_i32 dim 1 : vector<8x256xf32>, i32 -> vector<8x256xf32>
    %16 = vector.extract_strided_slice %15 {offsets = [0, 0], sizes = [8, 128], strides = [1, 1]} : vector<8x256xf32> to vector<8x128xf32>
    %17 = vector.extract_strided_slice %0 {offsets = [0, 1], sizes = [8, 1], strides = [1, 1]} : vector<8x9xf32> to vector<8x1xf32>
    %18 = vector.broadcast %17 : vector<8x1xf32> to vector<8x128xf32>
    %19 = arith.mulf %16, %18 : vector<8x128xf32>
    %20 = arith.addf %14, %19 : vector<8x128xf32>
    %c254_i32 = arith.constant 254 : i32
    %21 = tpu.dynamic_rotate %5 by %c254_i32 dim 1 : vector<8x256xf32>, i32 -> vector<8x256xf32>
    %22 = vector.extract_strided_slice %21 {offsets = [0, 0], sizes = [8, 128], strides = [1, 1]} : vector<8x256xf32> to vector<8x128xf32>
    %23 = vector.extract_strided_slice %0 {offsets = [0, 2], sizes = [8, 1], strides = [1, 1]} : vector<8x9xf32> to vector<8x1xf32>
    %24 = vector.broadcast %23 : vector<8x1xf32> to vector<8x128xf32>
    %25 = arith.mulf %22, %24 : vector<8x128xf32>
    %26 = arith.addf %20, %25 : vector<8x128xf32>
    %c253_i32 = arith.constant 253 : i32
    %27 = tpu.dynamic_rotate %5 by %c253_i32 dim 1 : vector<8x256xf32>, i32 -> vector<8x256xf32>
    %28 = vector.extract_strided_slice %27 {offsets = [0, 0], sizes = [8, 128], strides = [1, 1]} : vector<8x256xf32> to vector<8x128xf32>
    %29 = vector.extract_strided_slice %0 {offsets = [0, 3], sizes = [8, 1], strides = [1, 1]} : vector<8x9xf32> to vector<8x1xf32>
    %30 = vector.broadcast %29 : vector<8x1xf32> to vector<8x128xf32>
    %31 = arith.mulf %28, %30 : vector<8x128xf32>
    %32 = arith.addf %26, %31 : vector<8x128xf32>
    %c252_i32 = arith.constant 252 : i32
    %33 = tpu.dynamic_rotate %5 by %c252_i32 dim 1 : vector<8x256xf32>, i32 -> vector<8x256xf32>
    %34 = vector.extract_strided_slice %33 {offsets = [0, 0], sizes = [8, 128], strides = [1, 1]} : vector<8x256xf32> to vector<8x128xf32>
    %35 = vector.extract_strided_slice %0 {offsets = [0, 4], sizes = [8, 1], strides = [1, 1]} : vector<8x9xf32> to vector<8x1xf32>
    %36 = vector.broadcast %35 : vector<8x1xf32> to vector<8x128xf32>
    %37 = arith.mulf %34, %36 : vector<8x128xf32>
    %38 = arith.addf %32, %37 : vector<8x128xf32>
    %c251_i32 = arith.constant 251 : i32
    %39 = tpu.dynamic_rotate %5 by %c251_i32 dim 1 : vector<8x256xf32>, i32 -> vector<8x256xf32>
    %40 = vector.extract_strided_slice %39 {offsets = [0, 0], sizes = [8, 128], strides = [1, 1]} : vector<8x256xf32> to vector<8x128xf32>
    %41 = vector.extract_strided_slice %0 {offsets = [0, 5], sizes = [8, 1], strides = [1, 1]} : vector<8x9xf32> to vector<8x1xf32>
    %42 = vector.broadcast %41 : vector<8x1xf32> to vector<8x128xf32>
    %43 = arith.mulf %40, %42 : vector<8x128xf32>
    %44 = arith.addf %38, %43 : vector<8x128xf32>
    %c250_i32 = arith.constant 250 : i32
    %45 = tpu.dynamic_rotate %5 by %c250_i32 dim 1 : vector<8x256xf32>, i32 -> vector<8x256xf32>
    %46 = vector.extract_strided_slice %45 {offsets = [0, 0], sizes = [8, 128], strides = [1, 1]} : vector<8x256xf32> to vector<8x128xf32>
    %47 = vector.extract_strided_slice %0 {offsets = [0, 6], sizes = [8, 1], strides = [1, 1]} : vector<8x9xf32> to vector<8x1xf32>
    %48 = vector.broadcast %47 : vector<8x1xf32> to vector<8x128xf32>
    %49 = arith.mulf %46, %48 : vector<8x128xf32>
    %50 = arith.addf %44, %49 : vector<8x128xf32>
    %c249_i32 = arith.constant 249 : i32
    %51 = tpu.dynamic_rotate %5 by %c249_i32 dim 1 : vector<8x256xf32>, i32 -> vector<8x256xf32>
    %52 = vector.extract_strided_slice %51 {offsets = [0, 0], sizes = [8, 128], strides = [1, 1]} : vector<8x256xf32> to vector<8x128xf32>
    %53 = vector.extract_strided_slice %0 {offsets = [0, 7], sizes = [8, 1], strides = [1, 1]} : vector<8x9xf32> to vector<8x1xf32>
    %54 = vector.broadcast %53 : vector<8x1xf32> to vector<8x128xf32>
    %55 = arith.mulf %52, %54 : vector<8x128xf32>
    %56 = arith.addf %50, %55 : vector<8x128xf32>
    %c0_7 = arith.constant 0 : index
    %c0_8 = arith.constant 0 : index
    %57 = vector.load %arg5[%c0_7, %c0_8] : memref<8x128xf32, #tpu.memory_space<vmem>>, vector<8x128xf32>
    tpu.vector_store %arg5[%c0_7, %c0_8], %56 {strides = array<i32>} : memref<8x128xf32, #tpu.memory_space<vmem>>, vector<8x128xf32>,
    return
  }
  func.func @transform_0(%arg0: i32, %arg1: i32) -> (i32, i32, i32) {
    %c0_i32 = arith.constant 0 : i32
    %c0_i32_0 = arith.constant 0 : i32
    return %c0_i32, %arg0, %arg1 : i32, i32, i32
  }
  func.func @transform_1(%arg0: i32, %arg1: i32) -> (i32, i32, i32) {
    %c1_i32 = arith.constant 1 : i32
    %0 = arith.addi %arg1, %c1_i32 : i32
    %c1_i32_0 = arith.constant 1 : i32
    %1 = arith.muli %0, %c1_i32_0 : i32
    %c0_i32 = arith.constant 0 : i32
    %c0_i32_1 = arith.constant 0 : i32
    return %c0_i32, %arg0, %1 : i32, i32, i32
  }
  func.func @transform_2(%arg0: i32, %arg1: i32) -> (i32, i32) {
    %c0_i32 = arith.constant 0 : i32
    %c0_i32_0 = arith.constant 0 : i32
    return %arg0, %c0_i32 : i32, i32
  }
  func.func @transform_3(%arg0: i32, %arg1: i32) -> (i32, i32) {
    %c0_i32 = arith.constant 0 : i32
    return %arg0, %arg1 : i32, i32
  }
}

</mosaic_0001>

<llo_original>
// kernel: tpu_custom_call.1
$region0: #{tpu_custom_call.1}
  #allocation0 [shape = 'u32[]', space=smem, size = 0x4, offset = 0x4, fixed_abs, tag = 'smem constant byte address 0x4 - core index']
  #allocation1 [shape = 'u32[72,128]{1,0:T(1,128)}', space=vmem, size = 0x9000, scoped, tag = 'internal scratch']
  %s0 = inlined_call_operand.hbm [shape: f32[1,8,256], index: 0, kind: input, shape index: {}]
  %s1 = inlined_call_operand.hbm [shape: f32[1,8,256], index: 1, kind: input, shape index: {}]
  %s2 = inlined_call_operand.hbm [shape: f32[8,9], index: 2, kind: input, shape index: {}]
  %s3 = inlined_call_operand.hbm [shape: f32[8,128], index: 3, kind: output, shape index: {}]
  %s4 = sld [smem:[#allocation0]]
  $region34: #{tpu_custom_call.1} parent=0
    _
  %s6 = ssub.s32 1, %s4
  %s7 = scalar_select 0, %s6, %s4
  $region1: #{tpu_custom_call.1} parent=0
    #allocation2 [shape = 'u8[4096]{0}', space=vmem, size = 0x1000, scoped, tag = 'input window, operand 0, single buffered']
    #allocation3 [shape = 's32[1]{0}', space=sflag, size = 0x4, scoped, tag = 'scoped memory for tpu_custom_call.1']
    #allocation4 [shape = 's32[1]{0}', space=sflag, size = 0x4, scoped, tag = 'scoped memory for tpu_custom_call.1']
    #allocation5 [shape = 'u8[4096]{0}', space=vmem, size = 0x1000, scoped, tag = 'input window, operand 1, single buffered']
    #allocation6 [shape = 's32[1]{0}', space=sflag, size = 0x4, scoped, tag = 'scoped memory for tpu_custom_call.1']
    #allocation7 [shape = 'u8[4096]{0}', space=vmem, size = 0x1000, scoped, tag = 'input window, operand 2, single buffered']
    #allocation8 [shape = 'u8[4096]{0}', space=vmem, size = 0x1000, scoped, tag = 'output window, operand 0, single buffered']
    %8 = vsyncpa [#allocation3], 0
    %9 = vsyncpa [#allocation6], 0
    %10 = vsyncpa [#allocation4], 0
    // Predicated region
    $region2: #{tpu_custom_call.1} parent=1 // pred_check
      _
    $region3: #{tpu_custom_call.1} parent=1 // pred_check_branch
      %12 = sbr.rel (0) target = $region5
    $region4: #{tpu_custom_call.1} parent=1 // pred_region
      %14 = vsyncadd [#allocation3], 0
      %s16 = sshll.u32 %s0, 4
      %s17 = int_to_ptr.hbm [resolvable:$true] %s16
      %s18 = sshll.u32 [#allocation2], 4
      %s19 = int_to_ptr.vmem [resolvable:$true] %s18
      %21 = dma.hbm_to_vmem [thread:$0]  %s17, 128, %s19, [#allocation3]
    $region5: #{tpu_custom_call.1} parent=1 // pred_fallthru
      _
    // Predicated region
    $region6: #{tpu_custom_call.1} parent=1 // pred_check
      _
    $region7: #{tpu_custom_call.1} parent=1 // pred_check_branch
      %23 = sbr.rel (0) target = $region9
    $region8: #{tpu_custom_call.1} parent=1 // pred_region
      %s24 = sadd.s32 0, 1
      %26 = vsyncadd [#allocation6], 0
      %s27 = smul.addr %s24, 8
      %s28 = scalar_lea.hbm %s1, %s27
      %s30 = sshll.u32 %s28, 4
      %s31 = int_to_ptr.hbm [resolvable:$true] %s30
      %s32 = sshll.u32 [#allocation5], 4
      %s33 = int_to_ptr.vmem [resolvable:$true] %s32
      %35 = dma.hbm_to_vmem [thread:$0]  %s31, 128, %s33, [#allocation6]
    $region9: #{tpu_custom_call.1} parent=1 // pred_fallthru
      _
    // Predicated region
    $region10: #{tpu_custom_call.1} parent=1 // pred_check
      _
    $region11: #{tpu_custom_call.1} parent=1 // pred_check_branch
      %37 = sbr.rel (0) target = $region13
    $region12: #{tpu_custom_call.1} parent=1 // pred_region
      %39 = vsyncadd [#allocation6], 0
      %s41 = sshll.u32 %s2, 4
      %s42 = int_to_ptr.hbm [resolvable:$true] %s41
      %s43 = sshll.u32 [#allocation7], 4
      %s44 = int_to_ptr.vmem [resolvable:$true] %s43
      %46 = dma.hbm_to_vmem [thread:$0]  %s42, 128, %s44, [#allocation6]
    $region13: #{tpu_custom_call.1} parent=1 // pred_fallthru
      _
    // Predicated region
    $region14: #{tpu_custom_call.1} parent=1 // pred_check
      _
    $region15: #{tpu_custom_call.1} parent=1 // pred_check_branch
      %48 = sbr.rel (0) target = $region17
    $region16: #{tpu_custom_call.1} parent=1 // pred_region
      %50 = dma.done [#allocation3], 128
    $region17: #{tpu_custom_call.1} parent=1 // pred_fallthru
      _
    // Predicated region
    $region18: #{tpu_custom_call.1} parent=1 // pred_check
      _
    $region19: #{tpu_custom_call.1} parent=1 // pred_check_branch
      %52 = sbr.rel (0) target = $region21
    $region20: #{tpu_custom_call.1} parent=1 // pred_region
      %54 = dma.done [#allocation6], 128
    $region21: #{tpu_custom_call.1} parent=1 // pred_fallthru
      _
    // Predicated region
    $region22: #{tpu_custom_call.1} parent=1 // pred_check
      _
    $region23: #{tpu_custom_call.1} parent=1 // pred_check_branch
      %56 = sbr.rel (0) target = $region25
    $region24: #{tpu_custom_call.1} parent=1 // pred_region
      %58 = dma.done [#allocation6], 128
    $region25: #{tpu_custom_call.1} parent=1 // pred_fallthru
      _
    %s59 = sadd.s32 0, 1
    %v60 = vld [vmem:[#allocation7] sm:$0xff]
    %v61 = vld [vmem:[#allocation2] sm:$0xff]
    %v62 = vld [vmem:[#allocation5] sm:$0xff]
    %64 = vset.pattern.permute.xlu0 8
    %65 = vperm.xlu0 %64, %v60
    %v66 = vpop.permute.xlu0 %65
    %v68 = vadd.f32 %v66, 0.0
    %69 = vset.pattern.permute.xlu0 0
    %70 = vperm.xlu0 %69, %v60
    %v71 = vpop.permute.xlu0 %70
    %v73 = vmul.f32 %v61, %v71
    %v74 = vadd.f32 %v68, %v73
    %75 = vrot.lane.b32.xlu0 %v61, 127
    %v76 = vpop.permute.xlu0 %75
    %77 = vrot.lane.b32.xlu0 %v62, 127
    %v78 = vpop.permute.xlu0 %77
    %v79 = vlaneseq
    %v80 = vand.u32 %v79, 127
    %vm81 = vcmp.lt.s32.totalorder %v80, 127
    %v82 = vsel %vm81, %v76, %v78
    %83 = vset.pattern.permute.xlu0 1
    %84 = vperm.xlu0 %83, %v60
    %v85 = vpop.permute.xlu0 %84
    %v87 = vmul.f32 %v82, %v85
    %v88 = vadd.f32 %v74, %v87
    %89 = vrot.lane.b32.xlu0 %v61, 126
    %v90 = vpop.permute.xlu0 %89
    %91 = vrot.lane.b32.xlu0 %v62, 126
    %v92 = vpop.permute.xlu0 %91
    %vm93 = vcmp.lt.s32.totalorder %v80, 126
    %v94 = vsel %vm93, %v90, %v92
    %95 = vset.pattern.permute.xlu0 2
    %96 = vperm.xlu0 %95, %v60
    %v97 = vpop.permute.xlu0 %96
    %v99 = vmul.f32 %v94, %v97
    %v100 = vadd.f32 %v88, %v99
    %101 = vrot.lane.b32.xlu0 %v61, 125
    %v102 = vpop.permute.xlu0 %101
    %103 = vrot.lane.b32.xlu0 %v62, 125
    %v104 = vpop.permute.xlu0 %103
    %vm105 = vcmp.lt.s32.totalorder %v80, 125
    %v106 = vsel %vm105, %v102, %v104
    %107 = vset.pattern.permute.xlu0 3
    %108 = vperm.xlu0 %107, %v60
    %v109 = vpop.permute.xlu0 %108
    %v111 = vmul.f32 %v106, %v109
    %v112 = vadd.f32 %v100, %v111
    %113 = vrot.lane.b32.xlu0 %v61, 124
    %v114 = vpop.permute.xlu0 %113
    %115 = vrot.lane.b32.xlu0 %v62, 124
    %v116 = vpop.permute.xlu0 %115
    %vm117 = vcmp.lt.s32.totalorder %v80, 124
    %v118 = vsel %vm117, %v114, %v116
    %119 = vset.pattern.permute.xlu0 4
    %120 = vperm.xlu0 %119, %v60
    %v121 = vpop.permute.xlu0 %120
    %v123 = vmul.f32 %v118, %v121
    %v124 = vadd.f32 %v112, %v123
    %125 = vrot.lane.b32.xlu0 %v61, 123
    %v126 = vpop.permute.xlu0 %125
    %127 = vrot.lane.b32.xlu0 %v62, 123
    %v128 = vpop.permute.xlu0 %127
    %vm129 = vcmp.lt.s32.totalorder %v80, 123
    %v130 = vsel %vm129, %v126, %v128
    %131 = vset.pattern.permute.xlu0 5
    %132 = vperm.xlu0 %131, %v60
    %v133 = vpop.permute.xlu0 %132
    %v135 = vmul.f32 %v130, %v133
    %v136 = vadd.f32 %v124, %v135
    %137 = vrot.lane.b32.xlu0 %v61, 122
    %v138 = vpop.permute.xlu0 %137
    %139 = vrot.lane.b32.xlu0 %v62, 122
    %v140 = vpop.permute.xlu0 %139
    %vm141 = vcmp.lt.s32.totalorder %v80, 122
    %v142 = vsel %vm141, %v138, %v140
    %143 = vset.pattern.permute.xlu0 6
    %144 = vperm.xlu0 %143, %v60
    %v145 = vpop.permute.xlu0 %144
    %v147 = vmul.f32 %v142, %v145
    %v148 = vadd.f32 %v136, %v147
    %149 = vrot.lane.b32.xlu0 %v61, 121
    %v150 = vpop.permute.xlu0 %149
    %151 = vrot.lane.b32.xlu0 %v62, 121
    %v152 = vpop.permute.xlu0 %151
    %vm153 = vcmp.lt.s32.totalorder %v80, 121
    %v154 = vsel %vm153, %v150, %v152
    %155 = vset.pattern.permute.xlu0 7
    %156 = vperm.xlu0 %155, %v60
    %v157 = vpop.permute.xlu0 %156
    %v159 = vmul.f32 %v154, %v157
    %v160 = vadd.f32 %v148, %v159
    %161 = vst [vmem:[#allocation8] sm:$0xff] %v160
    // Predicated region
    $region26: #{tpu_custom_call.1} parent=1 // pred_check
      _
    $region27: #{tpu_custom_call.1} parent=1 // pred_check_branch
      %163 = sbr.rel (0) target = $region29
    $region28: #{tpu_custom_call.1} parent=1 // pred_region
      %165 = vsyncadd [#allocation4], 0
      %s167 = sshll.u32 [#allocation8], 4
      %s168 = int_to_ptr.vmem [resolvable:$true] %s167
      %s169 = sshll.u32 %s3, 4
      %s170 = int_to_ptr.hbm [resolvable:$true] %s169
      %172 = dma.vmem_to_hbm [thread:$0]  %s168, 128, %s170, [#allocation4]
    $region29: #{tpu_custom_call.1} parent=1 // pred_fallthru
      _
    // Predicated region
    $region30: #{tpu_custom_call.1} parent=1 // pred_check
      _
    $region31: #{tpu_custom_call.1} parent=1 // pred_check_branch
      %174 = sbr.rel (0) target = $region33
    $region32: #{tpu_custom_call.1} parent=1 // pred_region
      %176 = dma.done [#allocation4], 128
    $region33: #{tpu_custom_call.1} parent=1 // pred_fallthru
      _
    %177 = vsyncpa [#allocation3], 1
    %178 = vsyncpa [#allocation6], 1
    %179 = vsyncpa [#allocation4], 1

</llo_original>
